<compile_context>
chip_gen: v5e
topology: v5e:2x2
jax: 0.10.0
libtpu: 0.0.40
codegen_flags: <defaults>
</compile_context>

<pallas_src>
import jax
import jax.numpy as jnp
from jax.experimental import pallas as pl
from jax.experimental.pallas import tpu as pltpu

_LANE = 128


def conv1x1_kernel(x_ref, w_ref, b_ref, o_ref):
    # x_ref: (1, Cin, thw), w_ref: (Cout, Cin), b_ref: (Cout, 1), o_ref: (1, Cout, thw)
    acc = jnp.dot(w_ref[...], x_ref[0], preferred_element_type=jnp.float32)
    o_ref[0] = (acc + b_ref[...]).astype(o_ref.dtype)


def _tpu_kind():
    try:
        return jax.devices()[0].device_kind.lower()
    except Exception:
        return ""


def _pick_spatial_tile(HW, bytes_for_thw, budget, cap, min_tiles):
    """Choose (thw, hw_padded).

    Preference order:
      1. thw == HW (single contiguous DMA per batch element, no padding) if it
         fits the VMEM budget and we don't need extra tiles for megacore.
      2. A lane-multiple divisor of HW (no padding), as large as possible within
         the budget/cap, giving >= min_tiles tiles.
      3. thw == HW if it fits (even if min_tiles not achievable without padding).
      4. Fallback: lane-multiple tile + padded HW (extra HBM pass; rare shapes only).
    """
    full_fits = bytes_for_thw(HW) <= budget
    if full_fits and min_tiles <= 1:
        return HW, HW
    if HW % _LANE == 0:
        t = (min(cap, HW // max(min_tiles, 1)) // _LANE) * _LANE
        while t >= _LANE:
            if HW % t == 0 and bytes_for_thw(t) <= budget:
                return t, HW
            t -= _LANE
    if full_fits:
        return HW, HW
    t = (min(cap, ((HW + _LANE - 1) // _LANE) * _LANE) // _LANE) * _LANE
    while t > _LANE and bytes_for_thw(t) > budget:
        t -= _LANE
    t = max(t, _LANE)
    hw_pad = ((HW + t - 1) // t) * t
    return t, hw_pad


def conv1x1_pallas(x_nchw, weight, bias):
    """1x1 conv, PyTorch nn.Conv2d(kernel_size=1) semantics.

    x_nchw: (N, Cin, H, W); weight: (Cout, Cin, 1, 1); bias: (Cout,).
    Returns (N, Cout, H, W) in x's dtype.
    """
    N, Cin, H, W = x_nchw.shape
    Cout = weight.shape[0]
    HW = H * W

    out_dtype = x_nchw.dtype
    x_bytes = jnp.dtype(x_nchw.dtype).itemsize
    o_bytes = jnp.dtype(out_dtype).itemsize

    # NCHW-native: flatten spatial dims only (free reshape, no transpose).
    x3 = x_nchw.reshape(N, Cin, HW)
    # Cast weight once in the wrapper so the MXU runs in the activation dtype;
    # accumulation stays f32 inside the kernel. Bias stays f32 for the add.
    w_mat = weight.reshape(Cout, Cin).astype(x_nchw.dtype)
    b_mat = bias.reshape(Cout, 1).astype(jnp.float32)

    # Generation-aware knobs.
    kind = _tpu_kind()
    is_v5e = ("v5e" in kind) or ("v5 lite" in kind) or ("v5litepod" in kind)
    n_tc = 2 if "v7" in kind else 1          # v7x has 2 TensorCores per chip
    cap = 2048 if is_v5e else 4096           # >2048 buys little at v5e's HBM BW
    budget = 36 * 1024 * 1024                # selection budget: safe under v7x 64 MiB

    def bytes_for_thw(thw):
        # double-buffered X tile + double-buffered Y tile + resident weight + bias
        return (2 * Cin * thw * x_bytes
                + 2 * Cout * thw * o_bytes
                + Cout * Cin * x_bytes
                + Cout * 4)

    # Force >= 2 spatial tiles only when the batch axis can't feed both cores.
    min_tiles = 2 if (N == 1 and n_tc >= 2 and HW >= 2 * _LANE) else 1

    thw, hw_pad = _pick_spatial_tile(HW, bytes_for_thw, budget, cap, min_tiles)

    if hw_pad != HW:
        # Fallback only (HW not tileable without padding and too big for one tile).
        x3 = jnp.pad(x3, ((0, 0), (0, 0), (0, hw_pad - HW)))

    grid = (N, hw_pad // thw)

    needed = bytes_for_thw(thw)
    vmem_limit = min(40 * 1024 * 1024,
                     max(8 * 1024 * 1024, int(1.5 * needed) + (2 << 20)))

    cost = pl.CostEstimate(
        flops=2 * N * HW * Cin * Cout,
        transcendentals=0,
        bytes_accessed=(N * Cin * HW * x_bytes
                        + N * Cout * HW * o_bytes
                        + Cout * Cin * x_bytes + Cout * 4),
    )

    y3 = pl.pallas_call(
        conv1x1_kernel,
        out_shape=jax.ShapeDtypeStruct((N, Cout, hw_pad), out_dtype),
        grid_spec=pltpu.PrefetchScalarGridSpec(
            num_scalar_prefetch=0,
            grid=grid,
            in_specs=[
                pl.BlockSpec((1, Cin, thw), lambda n, j: (n, 0, j)),
                pl.BlockSpec((Cout, Cin), lambda n, j: (0, 0)),
                pl.BlockSpec((Cout, 1), lambda n, j: (0, 0)),
            ],
            out_specs=pl.BlockSpec((1, Cout, thw), lambda n, j: (n, 0, j)),
        ),
        compiler_params=pltpu.CompilerParams(
            dimension_semantics=("parallel", "parallel"),
            vmem_limit_bytes=vmem_limit,
        ),
        cost_estimate=cost,
    )(x3, w_mat, b_mat)

    if hw_pad != HW:
        y3 = y3[:, :, :HW]
    return y3.reshape(N, Cout, H, W)


if __name__ == "__main__":
    # Module defaults: in_channels=512, out_channels=8. HW = 256 -> thw == HW,
    # one contiguous tile per batch element, grid = (2, 1), no padding, no slice.
    # TODO(synk): at this tiny shape (~1 MiB traffic) the op is launch-overhead
    # bound; in a real model fuse this 1x1 conv into the producing kernel.
    N, Cin, H, W = 2, 512, 16, 16
    Cout = 8

    key = jax.random.PRNGKey(0)
    kx, kw, kb = jax.random.split(key, 3)

    x = jax.random.normal(kx, (N, Cin, H, W), dtype=jnp.float32)
    # Conv2d-shaped synthetic params: weight (Cout, Cin, 1, 1), bias (Cout,)
    fan_in = Cin  # kernel_size = 1
    bound = 1.0 / (fan_in ** 0.5)
    weight = jax.random.uniform(kw, (Cout, Cin, 1, 1), jnp.float32, -bound, bound)
    bias = jax.random.uniform(kb, (Cout,), jnp.float32, -bound, bound)

    y = conv1x1_pallas(x, weight, bias)
    y = jax.block_until_ready(y)

    # Reference check against plain JAX (same math as nn.Conv2d with kernel_size=1)
    ref = jnp.einsum("nchw,oc->nohw", x, weight.reshape(Cout, Cin)) \
        + bias[None, :, None, None]
    assert y.shape == (N, Cout, H, W)
    assert jnp.allclose(y, ref, atol=1e-4, rtol=1e-4)

    print("KERNEL_OK")
</pallas_src>

<mosaic_0001>
module attributes {stable_mosaic.version = 11 : i64} {
  func.func @conv1x1_kernel(%arg0: i32, %arg1: i32, %arg2: memref<1x512x256xf32, #tpu.memory_space<vmem>>, %arg3: memref<8x512xf32, #tpu.memory_space<vmem>>, %arg4: memref<8x1xf32, #tpu.memory_space<vmem>>, %arg5: memref<1x8x256xf32, #tpu.memory_space<vmem>>) attributes {dimension_semantics = [#tpu.dimension_semantics<parallel>, #tpu.dimension_semantics<parallel>], iteration_bounds = array<i64: 2, 1>, scalar_prefetch = 0 : i64, scratch_operands = 0 : i64, tpu.core_type = #tpu.core_type<tc>, window_params = [{transform_indices = @transform_0, window_bounds = array<i64: 1, 512, 256>}, {pipeline_mode = #tpu.pipeline_mode<synchronous>, transform_indices = @transform_1, window_bounds = array<i64: 8, 512>}, {pipeline_mode = #tpu.pipeline_mode<synchronous>, transform_indices = @transform_2, window_bounds = array<i64: 8, 1>}, {transform_indices = @transform_3, window_bounds = array<i64: 1, 8, 256>}]} {
    %c0 = arith.constant 0 : index
    %c0_0 = arith.constant 0 : index
    %0 = vector.load %arg3[%c0, %c0_0] : memref<8x512xf32, #tpu.memory_space<vmem>>, vector<8x512xf32>
    %c0_1 = arith.constant 0 : index
    %c0_2 = arith.constant 0 : index
    %c0_3 = arith.constant 0 : index
    %1 = vector.load %arg2[%c0_1, %c0_2, %c0_3] : memref<1x512x256xf32, #tpu.memory_space<vmem>>, vector<1x512x256xf32>
    %2 = vector.shape_cast %1 : vector<1x512x256xf32> to vector<512x256xf32>
    %cst = arith.constant dense<0.000000e+00> : vector<8x256xf32>
    %3 = tpu.matmul %0, %2, %cst {dimension_numbers = #tpu.dot_dimension_numbers<[1], [0], [0], [1], [0, 0, 1, 1], [], []>} : vector<8x512xf32>, vector<512x256xf32>, vector<8x256xf32> -> vector<8x256xf32>
    %c0_4 = arith.constant 0 : index
    %c0_5 = arith.constant 0 : index
    %4 = vector.load %arg4[%c0_4, %c0_5] : memref<8x1xf32, #tpu.memory_space<vmem>>, vector<8x1xf32>
    %5 = vector.broadcast %4 : vector<8x1xf32> to vector<8x256xf32>
    %6 = arith.addf %3, %5 : vector<8x256xf32>
    %c0_6 = arith.constant 0 : index
    %c0_7 = arith.constant 0 : index
    %c0_8 = arith.constant 0 : index
    %7 = vector.load %arg5[%c0_6, %c0_7, %c0_8] : memref<1x8x256xf32, #tpu.memory_space<vmem>>, vector<1x8x256xf32>
    %8 = vector.shape_cast %7 : vector<1x8x256xf32> to vector<8x256xf32>
    %9 = vector.shape_cast %6 : vector<8x256xf32> to vector<1x8x256xf32>
    tpu.vector_store %arg5[%c0_6, %c0_7, %c0_8], %9 {strides = array<i32>} : memref<1x8x256xf32, #tpu.memory_space<vmem>>, vector<1x8x256xf32>,
    return
  }
  func.func @transform_0(%arg0: i32, %arg1: i32) -> (i32, i32, i32) {
    %c0_i32 = arith.constant 0 : i32
    %c0_i32_0 = arith.constant 0 : i32
    return %arg0, %c0_i32, %arg1 : i32, i32, i32
  }
  func.func @transform_1(%arg0: i32, %arg1: i32) -> (i32, i32) {
    %c0_i32 = arith.constant 0 : i32
    %c0_i32_0 = arith.constant 0 : i32
    %c0_i32_1 = arith.constant 0 : i32
    return %c0_i32, %c0_i32_0 : i32, i32
  }
  func.func @transform_2(%arg0: i32, %arg1: i32) -> (i32, i32) {
    %c0_i32 = arith.constant 0 : i32
    %c0_i32_0 = arith.constant 0 : i32
    %c0_i32_1 = arith.constant 0 : i32
    return %c0_i32, %c0_i32_0 : i32, i32
  }
  func.func @transform_3(%arg0: i32, %arg1: i32) -> (i32, i32, i32) {
    %c0_i32 = arith.constant 0 : i32
    %c0_i32_0 = arith.constant 0 : i32
    return %arg0, %c0_i32, %arg1 : i32, i32, i32
  }
}

</mosaic_0001>

<llo_original>
// kernel: tpu_custom_call.1
$region0: #{tpu_custom_call.1}
  #allocation0 [shape = 'u32[]', space=smem, size = 0x4, offset = 0x4, fixed_abs, tag = 'smem constant byte address 0x4 - core index']
  #allocation1 [shape = 'u32[72,128]{1,0:T(1,128)}', space=vmem, size = 0x9000, scoped, tag = 'internal scratch']
  %s0 = inlined_call_operand.hbm [shape: f32[2,512,256], index: 0, kind: input, shape index: {}]
  %s1 = inlined_call_operand.hbm [shape: f32[8,512], index: 1, kind: input, shape index: {}]
  %s2 = inlined_call_operand.vmem [shape: f32[8,1], index: 2, kind: input, shape index: {}]
  %s3 = inlined_call_operand.hbm [shape: f32[2,8,256], index: 3, kind: output, shape index: {}]
  %s4 = sld [smem:[#allocation0]]
  $region53: #{tpu_custom_call.1} parent=0
    _
  %s6 = ssub.s32 1, %s4
  %s7 = scalar_select 0, %s6, %s4
  $region1: #{tpu_custom_call.1} parent=0
    #allocation2 [shape = 'u8[1048576]{0}', space=vmem, size = 0x100000, scoped, tag = 'input window, operand 0']
    #allocation3 [shape = 's32[2]{0}', space=sflag, size = 0x8, scoped, tag = 'scoped memory for tpu_custom_call.1']
    #allocation4 [shape = 's32[2]{0}', space=sflag, size = 0x8, scoped, tag = 'scoped memory for tpu_custom_call.1']
    #allocation5 [shape = 'u8[16384]{0}', space=vmem, size = 0x4000, scoped, tag = 'input window, operand 1, single buffered']
    #allocation6 [shape = 's32[1]{0}', space=sflag, size = 0x4, scoped, tag = 'scoped memory for tpu_custom_call.1']
    #allocation7 [shape = 'u8[16384]{0}', space=vmem, size = 0x4000, scoped, tag = 'output window, operand 0']
    %8 = vsyncpa [#allocation3], 0
    %s9 = scalar_lea.sflag [#allocation3], 1
    %10 = vsyncpa %s9, 0
    %11 = vsyncpa [#allocation6], 0
    %12 = vsyncpa [#allocation4], 0
    %s13 = scalar_lea.sflag [#allocation4], 1
    %14 = vsyncpa %s13, 0
    loop: start=0, step=1, limit=4
    $region2: #{tpu_custom_call.1} parent=1 // loop_pre_header
      _
    $region3: #{tpu_custom_call.1} parent=1 // loop_header
      %s16 = sphi 0, %s20
      %p17 = scmp.ge.s32.totalorder %s16, 4
      %s23 = sphi 0, %s35
      %s24 = sphi 0, %s31
      %s25 = sphi 0, %s23
      %s26 = sphi 0, %s24
      %s27 = sphi 0, %s25
      %s28 = sphi 0, %s26
      %s40 = sphi 0, %s42
      %s43 = sphi 0, %s40
      %s44 = sphi 0, %s43
      %s60 = sphi 0, %s44
      %s64 = sphi 0, %s64
      %s66 = sphi 0, %s64
      %s67 = sphi 0, %s66
      %s81 = sphi 0, %s67
      %s85 = sphi 0, %s85
      %s87 = sphi 0, %s85
      %s88 = sphi 0, %s87
      %s102 = sphi 0, %s88
      %s110 = sphi 0, %s112
      %s113 = sphi 0, %s110
      %s114 = sphi 0, %s113
      %s130 = sphi 0, %s114
    $region4: #{tpu_custom_call.1} parent=1 // loop_header_branch
      %19 = sbr.rel (%p17) target = $region8
    $region5: #{tpu_custom_call.1} parent=1 // loop_body
      %s21 = ssub.s32 %s16, 1
      %s22 = ssub.s32 %s16, 2
      %s29 = sadd.s32 1, %s24
      %p30 = scmp.ge.s32.totalorder %s29, 1
      %s31 = scalar_select %p30, 0, %s29
      %s32 = sadd.s32 1, %s23
      %s33 = scalar_select %p30, %s32, %s23
      %p34 = scmp.ge.s32.totalorder %s33, 2
      %s35 = scalar_select %p34, 0, %s33
      %s36 = ssub.s32 %s23, %s35
      %s37 = ssub.s32 %s24, %s31
      %s38 = sor.u32 %s36, %s37
      %p39 = scmp.eq.s32.totalorder %s38, 0
      %s41 = sadd.s32 %s40, 1
      %s42 = scalar_select %p39, %s40, %s41
      %p45 = pneg %p39
      %p46 = scmp.eq.s32.totalorder %s16, 1
      %p47 = por %p45, %p46
      %p48 = scmp.ne.s32.totalorder %s40, %s43
      %p49 = scmp.eq.s32.totalorder %s16, 0
      %p50 = por %p48, %p49
      %p51 = scmp.ne.s32.totalorder %s40, %s43
      %p52 = scmp.eq.s32.totalorder %s21, 1
      %p53 = por %p51, %p52
      %p54 = scmp.ne.s32.totalorder %s43, %s44
      %p55 = scmp.eq.s32.totalorder %s21, 0
      %p56 = por %p54, %p55
      %p57 = scmp.ne.s32.totalorder %s43, %s44
      %p58 = scmp.eq.s32.totalorder %s22, 1
      %p59 = por %p57, %p58
      %p61 = scmp.ne.s32.totalorder %s44, %s60
      %p62 = scmp.eq.s32.totalorder %s22, 0
      %p63 = por %p61, %p62
      %s65 = sadd.s32 %s64, 1
      %p68 = scmp.eq.s32.totalorder %s16, 1
      %p69 = scmp.ne.s32.totalorder %s64, %s66
      %p70 = scmp.eq.s32.totalorder %s16, 0
      %p71 = por %p69, %p70
      %p72 = scmp.ne.s32.totalorder %s64, %s66
      %p73 = scmp.eq.s32.totalorder %s21, 1
      %p74 = por %p72, %p73
      %p75 = scmp.ne.s32.totalorder %s66, %s67
      %p76 = scmp.eq.s32.totalorder %s21, 0
      %p77 = por %p75, %p76
      %p78 = scmp.ne.s32.totalorder %s66, %s67
      %p79 = scmp.eq.s32.totalorder %s22, 1
      %p80 = por %p78, %p79
      %p82 = scmp.ne.s32.totalorder %s67, %s81
      %p83 = scmp.eq.s32.totalorder %s22, 0
      %p84 = por %p82, %p83
      %s86 = sadd.s32 %s85, 1
      %p89 = scmp.eq.s32.totalorder %s16, 1
      %p90 = scmp.ne.s32.totalorder %s85, %s87
      %p91 = scmp.eq.s32.totalorder %s16, 0
      %p92 = por %p90, %p91
      %p93 = scmp.ne.s32.totalorder %s85, %s87
      %p94 = scmp.eq.s32.totalorder %s21, 1
      %p95 = por %p93, %p94
      %p96 = scmp.ne.s32.totalorder %s87, %s88
      %p97 = scmp.eq.s32.totalorder %s21, 0
      %p98 = por %p96, %p97
      %p99 = scmp.ne.s32.totalorder %s87, %s88
      %p100 = scmp.eq.s32.totalorder %s22, 1
      %p101 = por %p99, %p100
      %p103 = scmp.ne.s32.totalorder %s88, %s102
      %p104 = scmp.eq.s32.totalorder %s22, 0
      %p105 = por %p103, %p104
      %s106 = ssub.s32 %s23, %s35
      %s107 = ssub.s32 %s24, %s31
      %s108 = sor.u32 %s106, %s107
      %p109 = scmp.eq.s32.totalorder %s108, 0
      %s111 = sadd.s32 %s110, 1
      %s112 = scalar_select %p109, %s110, %s111
      %p115 = pneg %p109
      %p116 = scmp.eq.s32.totalorder %s16, 1
      %p117 = por %p115, %p116
      %p118 = scmp.ne.s32.totalorder %s110, %s113
      %p119 = scmp.eq.s32.totalorder %s16, 0
      %p120 = por %p118, %p119
      %p121 = scmp.ne.s32.totalorder %s110, %s113
      %p122 = scmp.eq.s32.totalorder %s21, 1
      %p123 = por %p121, %p122
      %p124 = scmp.ne.s32.totalorder %s113, %s114
      %p125 = scmp.eq.s32.totalorder %s21, 0
      %p126 = por %p124, %p125
      %p127 = scmp.ne.s32.totalorder %s113, %s114
      %p128 = scmp.eq.s32.totalorder %s22, 1
      %p129 = por %p127, %p128
      %p131 = scmp.ne.s32.totalorder %s114, %s130
      %p132 = scmp.eq.s32.totalorder %s22, 0
      %p133 = por %p131, %p132
      %p134 = scmp.le.s32.totalorder 1, %s16
      %p135 = scmp.lt.s32.totalorder %s16, 3
      %p136 = pnand %p134, %p135
      %p137 = pneg %p136
      // Predicated region
      $region9: #{tpu_custom_call.1} parent=5 // pred_check
        _
      $region10: #{tpu_custom_call.1} parent=5 // pred_check_branch
        %139 = sbr.rel (%p136) target = $region12
      $region11: #{tpu_custom_call.1} parent=5 // pred_region
        %s140 = ssub.s32 %s16, 1
        // Predicated region
        $region13: #{tpu_custom_call.1} parent=11 // pred_check
          %p141 = pneg %p77
        $region14: #{tpu_custom_call.1} parent=11 // pred_check_branch
          %143 = sbr.rel (%p141) target = $region16
        $region15: #{tpu_custom_call.1} parent=11 // pred_region
          %145 = vsyncadd [#allocation6], 0
          %s147 = sshll.u32 %s1, 4
          %s148 = int_to_ptr.hbm [resolvable:$true] %s147
          %s149 = sshll.u32 [#allocation5], 4
          %s150 = int_to_ptr.vmem [resolvable:$true] %s149
          %152 = dma.hbm_to_vmem [thread:$0]  %s148, 512, %s150, [#allocation6]
        $region16: #{tpu_custom_call.1} parent=11 // pred_fallthru
          _
        // Predicated region
        $region17: #{tpu_custom_call.1} parent=11 // pred_check
          %p153 = pneg %p98
        $region18: #{tpu_custom_call.1} parent=11 // pred_check_branch
          %155 = sbr.rel (%p153) target = $region20
        $region19: #{tpu_custom_call.1} parent=11 // pred_region
          _
        $region20: #{tpu_custom_call.1} parent=11 // pred_fallthru
          _
      $region12: #{tpu_custom_call.1} parent=5 // pred_fallthru
        _
      %p156 = scmp.lt.s32.totalorder %s16, 2
      // Predicated region
      $region21: #{tpu_custom_call.1} parent=5 // pred_check
        %p157 = pneg %p156
      $region22: #{tpu_custom_call.1} parent=5 // pred_check_branch
        %159 = sbr.rel (%p157) target = $region24
      $region23: #{tpu_custom_call.1} parent=5 // pred_region
        // Predicated region
        $region25: #{tpu_custom_call.1} parent=23 // pred_check
          %p160 = pneg %p50
        $region26: #{tpu_custom_call.1} parent=23 // pred_check_branch
          %162 = sbr.rel (%p160) target = $region28
        $region27: #{tpu_custom_call.1} parent=23 // pred_region
          %s163 = sand.u32 %s40, 1
          %s164 = scalar_lea.sflag [#allocation3], %s163
          %s165 = sand.u32 %s40, 1
          %s166 = smul.addr %s165, 1024
          %s167 = scalar_lea.vmem [#allocation2], %s166
          %s168 = smul.u32 2, %s24
          %170 = vsyncadd %s164, 0
          %s171 = smul.addr %s23, 128
          %s172 = sadd.s32 %s168, %s171
          %s173 = smul.addr %s172, 8
          %s174 = scalar_lea.hbm %s0, %s173
          %s175 = sshll.u32 %s174, 4
          %s176 = int_to_ptr.hbm [resolvable:$true] %s175
          %s177 = sshll.u32 %s167, 4
          %s178 = int_to_ptr.vmem [resolvable:$true] %s177
          %183 = dma.hbm_to_vmem [thread:$0]  %s176, 16384, %s178, %s164, 256, 256, 16
        $region28: #{tpu_custom_call.1} parent=23 // pred_fallthru
          _
      $region24: #{tpu_custom_call.1} parent=5 // pred_fallthru
        _
      %p184 = scmp.le.s32.totalorder 1, %s16
      %p185 = scmp.lt.s32.totalorder %s16, 3
      %p186 = pnand %p184, %p185
      %p187 = pneg %p186
      // Predicated region
      $region29: #{tpu_custom_call.1} parent=5 // pred_check
        _
      $region30: #{tpu_custom_call.1} parent=5 // pred_check_branch
        %189 = sbr.rel (%p186) target = $region32
      $region31: #{tpu_custom_call.1} parent=5 // pred_region
        %s190 = ssub.s32 %s16, 1
        %s191 = sand.u32 %s43, 1
        %s192 = scalar_lea.sflag [#allocation3], %s191
        %s193 = sand.u32 %s43, 1
        %s194 = smul.addr %s193, 1024
        %s195 = scalar_lea.vmem [#allocation2], %s194
        // Predicated region
        $region33: #{tpu_custom_call.1} parent=31 // pred_check
          %p196 = pneg %p56
        $region34: #{tpu_custom_call.1} parent=31 // pred_check_branch
          %198 = sbr.rel (%p196) target = $region36
        $region35: #{tpu_custom_call.1} parent=31 // pred_region
          %200 = dma.done %s192, 16384
        $region36: #{tpu_custom_call.1} parent=31 // pred_fallthru
          _
        // Predicated region
        $region37: #{tpu_custom_call.1} parent=31 // pred_check
          %p201 = pneg %p77
        $region38: #{tpu_custom_call.1} parent=31 // pred_check_branch
          %203 = sbr.rel (%p201) target = $region40
        $region39: #{tpu_custom_call.1} parent=31 // pred_region
          %205 = dma.done [#allocation6], 512
        $region40: #{tpu_custom_call.1} parent=31 // pred_fallthru
          _
        %s206 = sand.u32 %s43, 1
        %s207 = scalar_lea.sflag [#allocation3], %s206
        %s208 = sand.u32 %s43, 1
        %s209 = smul.addr %s208, 1024
        %s210 = scalar_lea.vmem [#allocation2], %s209
        %p211 = pneg %p56
        %p212 = pneg %p53
        %p213 = pneg %p77
        %p214 = pneg %p74
        %p215 = pneg %p98
        %p216 = pneg %p95
        %p217 = pneg %p126
        %p218 = pneg %p123
        %s219 = sand.u32 %s113, 1
        %s220 = scalar_lea.sflag [#allocation4], %s219
        %s221 = sand.u32 %s113, 1
        %s222 = smul.addr %s221, 16
        %s223 = scalar_lea.vmem [#allocation7], %s222
        %s224 = smul.u32 2, %s26
        %s225 = smul.u32 2, %s26
        %v226 = vld [vmem:[#allocation5] sm:$0xff]
        %v227 = vld [vmem:[#allocation5 + $0x8] sm:$0xff]
        %v228 = vld [vmem:[#allocation5 + $0x10] sm:$0xff]
        %v229 = vld [vmem:[#allocation5 + $0x18] sm:$0xff]
        %v230 = vld [vmem:[%s195] sm:$0xff]
        %v231 = vld [vmem:[%s195 + $0x8] sm:$0xff]
        %v232 = vld [vmem:[%s195 + $0x10] sm:$0xff]
        %v233 = vld [vmem:[%s195 + $0x18] sm:$0xff]
        %v234 = vld [vmem:[%s195 + $0x20] sm:$0xff]
        %v235 = vld [vmem:[%s195 + $0x28] sm:$0xff]
        %v236 = vld [vmem:[%s195 + $0x30] sm:$0xff]
        %v237 = vld [vmem:[%s195 + $0x38] sm:$0xff]
        %v238 = vld [vmem:[%s195 + $0x40] sm:$0xff]
        %v239 = vld [vmem:[%s195 + $0x48] sm:$0xff]
        %v240 = vld [vmem:[%s195 + $0x50] sm:$0xff]
        %v241 = vld [vmem:[%s195 + $0x58] sm:$0xff]
        %v242 = vld [vmem:[%s195 + $0x60] sm:$0xff]
        %v243 = vld [vmem:[%s195 + $0x68] sm:$0xff]
        %v244 = vld [vmem:[%s195 + $0x70] sm:$0xff]
        %v245 = vld [vmem:[%s195 + $0x78] sm:$0xff]
        %v246 = vld [vmem:[%s195 + $0x80] sm:$0xff]
        %v247 = vld [vmem:[%s195 + $0x88] sm:$0xff]
        %v248 = vld [vmem:[%s195 + $0x90] sm:$0xff]
        %v249 = vld [vmem:[%s195 + $0x98] sm:$0xff]
        %v250 = vld [vmem:[%s195 + $0xa0] sm:$0xff]
        %v251 = vld [vmem:[%s195 + $0xa8] sm:$0xff]
        %v252 = vld [vmem:[%s195 + $0xb0] sm:$0xff]
        %v253 = vld [vmem:[%s195 + $0xb8] sm:$0xff]
        %v254 = vld [vmem:[%s195 + $0xc0] sm:$0xff]
        %v255 = vld [vmem:[%s195 + $0xc8] sm:$0xff]
        %v256 = vld [vmem:[%s195 + $0xd0] sm:$0xff]
        %v257 = vld [vmem:[%s195 + $0xd8] sm:$0xff]
        %v258 = vld [vmem:[%s195 + $0xe0] sm:$0xff]
        %v259 = vld [vmem:[%s195 + $0xe8] sm:$0xff]
        %v260 = vld [vmem:[%s195 + $0xf0] sm:$0xff]
        %v261 = vld [vmem:[%s195 + $0xf8] sm:$0xff]
        %v262 = vld [vmem:[%s195 + $0x100] sm:$0xff]
        %v263 = vld [vmem:[%s195 + $0x108] sm:$0xff]
        %v264 = vld [vmem:[%s195 + $0x110] sm:$0xff]
        %v265 = vld [vmem:[%s195 + $0x118] sm:$0xff]
        %v266 = vld [vmem:[%s195 + $0x120] sm:$0xff]
        %v267 = vld [vmem:[%s195 + $0x128] sm:$0xff]
        %v268 = vld [vmem:[%s195 + $0x130] sm:$0xff]
        %v269 = vld [vmem:[%s195 + $0x138] sm:$0xff]
        %v270 = vld [vmem:[%s195 + $0x140] sm:$0xff]
        %v271 = vld [vmem:[%s195 + $0x148] sm:$0xff]
        %v272 = vld [vmem:[%s195 + $0x150] sm:$0xff]
        %v273 = vld [vmem:[%s195 + $0x158] sm:$0xff]
        %v274 = vld [vmem:[%s195 + $0x160] sm:$0xff]
        %v275 = vld [vmem:[%s195 + $0x168] sm:$0xff]
        %v276 = vld [vmem:[%s195 + $0x170] sm:$0xff]
        %v277 = vld [vmem:[%s195 + $0x178] sm:$0xff]
        %v278 = vld [vmem:[%s195 + $0x180] sm:$0xff]
        %v279 = vld [vmem:[%s195 + $0x188] sm:$0xff]
        %v280 = vld [vmem:[%s195 + $0x190] sm:$0xff]
        %v281 = vld [vmem:[%s195 + $0x198] sm:$0xff]
        %v282 = vld [vmem:[%s195 + $0x1a0] sm:$0xff]
        %v283 = vld [vmem:[%s195 + $0x1a8] sm:$0xff]
        %v284 = vld [vmem:[%s195 + $0x1b0] sm:$0xff]
        %v285 = vld [vmem:[%s195 + $0x1b8] sm:$0xff]
        %v286 = vld [vmem:[%s195 + $0x1c0] sm:$0xff]
        %v287 = vld [vmem:[%s195 + $0x1c8] sm:$0xff]
        %v288 = vld [vmem:[%s195 + $0x1d0] sm:$0xff]
        %v289 = vld [vmem:[%s195 + $0x1d8] sm:$0xff]
        %v290 = vld [vmem:[%s195 + $0x1e0] sm:$0xff]
        %v291 = vld [vmem:[%s195 + $0x1e8] sm:$0xff]
        %v292 = vld [vmem:[%s195 + $0x1f0] sm:$0xff]
        %v293 = vld [vmem:[%s195 + $0x1f8] sm:$0xff]
        %v294 = vld [vmem:[%s195 + $0x200] sm:$0xff]
        %v295 = vld [vmem:[%s195 + $0x208] sm:$0xff]
        %v296 = vld [vmem:[%s195 + $0x210] sm:$0xff]
        %v297 = vld [vmem:[%s195 + $0x218] sm:$0xff]
        %v298 = vld [vmem:[%s195 + $0x220] sm:$0xff]
        %v299 = vld [vmem:[%s195 + $0x228] sm:$0xff]
        %v300 = vld [vmem:[%s195 + $0x230] sm:$0xff]
        %v301 = vld [vmem:[%s195 + $0x238] sm:$0xff]
        %v302 = vld [vmem:[%s195 + $0x240] sm:$0xff]
        %v303 = vld [vmem:[%s195 + $0x248] sm:$0xff]
        %v304 = vld [vmem:[%s195 + $0x250] sm:$0xff]
        %v305 = vld [vmem:[%s195 + $0x258] sm:$0xff]
        %v306 = vld [vmem:[%s195 + $0x260] sm:$0xff]
        %v307 = vld [vmem:[%s195 + $0x268] sm:$0xff]
        %v308 = vld [vmem:[%s195 + $0x270] sm:$0xff]
        %v309 = vld [vmem:[%s195 + $0x278] sm:$0xff]
        %v310 = vld [vmem:[%s195 + $0x280] sm:$0xff]
        %v311 = vld [vmem:[%s195 + $0x288] sm:$0xff]
        %v312 = vld [vmem:[%s195 + $0x290] sm:$0xff]
        %v313 = vld [vmem:[%s195 + $0x298] sm:$0xff]
        %v314 = vld [vmem:[%s195 + $0x2a0] sm:$0xff]
        %v315 = vld [vmem:[%s195 + $0x2a8] sm:$0xff]
        %v316 = vld [vmem:[%s195 + $0x2b0] sm:$0xff]
        %v317 = vld [vmem:[%s195 + $0x2b8] sm:$0xff]
        %v318 = vld [vmem:[%s195 + $0x2c0] sm:$0xff]
        %v319 = vld [vmem:[%s195 + $0x2c8] sm:$0xff]
        %v320 = vld [vmem:[%s195 + $0x2d0] sm:$0xff]
        %v321 = vld [vmem:[%s195 + $0x2d8] sm:$0xff]
        %v322 = vld [vmem:[%s195 + $0x2e0] sm:$0xff]
        %v323 = vld [vmem:[%s195 + $0x2e8] sm:$0xff]
        %v324 = vld [vmem:[%s195 + $0x2f0] sm:$0xff]
        %v325 = vld [vmem:[%s195 + $0x2f8] sm:$0xff]
        %v326 = vld [vmem:[%s195 + $0x300] sm:$0xff]
        %v327 = vld [vmem:[%s195 + $0x308] sm:$0xff]
        %v328 = vld [vmem:[%s195 + $0x310] sm:$0xff]
        %v329 = vld [vmem:[%s195 + $0x318] sm:$0xff]
        %v330 = vld [vmem:[%s195 + $0x320] sm:$0xff]
        %v331 = vld [vmem:[%s195 + $0x328] sm:$0xff]
        %v332 = vld [vmem:[%s195 + $0x330] sm:$0xff]
        %v333 = vld [vmem:[%s195 + $0x338] sm:$0xff]
        %v334 = vld [vmem:[%s195 + $0x340] sm:$0xff]
        %v335 = vld [vmem:[%s195 + $0x348] sm:$0xff]
        %v336 = vld [vmem:[%s195 + $0x350] sm:$0xff]
        %v337 = vld [vmem:[%s195 + $0x358] sm:$0xff]
        %v338 = vld [vmem:[%s195 + $0x360] sm:$0xff]
        %v339 = vld [vmem:[%s195 + $0x368] sm:$0xff]
        %v340 = vld [vmem:[%s195 + $0x370] sm:$0xff]
        %v341 = vld [vmem:[%s195 + $0x378] sm:$0xff]
        %v342 = vld [vmem:[%s195 + $0x380] sm:$0xff]
        %v343 = vld [vmem:[%s195 + $0x388] sm:$0xff]
        %v344 = vld [vmem:[%s195 + $0x390] sm:$0xff]
        %v345 = vld [vmem:[%s195 + $0x398] sm:$0xff]
        %v346 = vld [vmem:[%s195 + $0x3a0] sm:$0xff]
        %v347 = vld [vmem:[%s195 + $0x3a8] sm:$0xff]
        %v348 = vld [vmem:[%s195 + $0x3b0] sm:$0xff]
        %v349 = vld [vmem:[%s195 + $0x3b8] sm:$0xff]
        %v350 = vld [vmem:[%s195 + $0x3c0] sm:$0xff]
        %v351 = vld [vmem:[%s195 + $0x3c8] sm:$0xff]
        %v352 = vld [vmem:[%s195 + $0x3d0] sm:$0xff]
        %v353 = vld [vmem:[%s195 + $0x3d8] sm:$0xff]
        %v354 = vld [vmem:[%s195 + $0x3e0] sm:$0xff]
        %v355 = vld [vmem:[%s195 + $0x3e8] sm:$0xff]
        %v356 = vld [vmem:[%s195 + $0x3f0] sm:$0xff]
        %v357 = vld [vmem:[%s195 + $0x3f8] sm:$0xff]
        %v358 = vld [vmem:[%s2] sm:$0xff]
        %360 = vset.pattern.permute.xlu0 0
        %361 = vperm.xlu0 %360, %v358
        %v362 = vpop.permute.xlu0 %361
        %364 = vmatpush.msra.mxu0 %v260
        %365 = vmatpush.msra.mxu0 %v258
        %366 = vmatpush.msra.mxu0 %v256
        %367 = vmatpush.msra.mxu0 %v254
        %368 = vmatpush.msra.mxu0 %v252
        %369 = vmatpush.msra.mxu0 %v250
        %370 = vmatpush.msra.mxu0 %v248
        %371 = vmatpush.msra.mxu0 %v246
        %372 = vmatpush.msra.mxu0 %v244
        %373 = vmatpush.msra.mxu0 %v242
        %374 = vmatpush.msra.mxu0 %v240
        %375 = vmatpush.msra.mxu0 %v238
        %376 = vmatpush.msra.mxu0 %v236
        %377 = vmatpush.msra.mxu0 %v234
        %378 = vmatpush.msra.mxu0 %v232
        %379 = vmatpush.msra.mxu0 %v230
        %380 = vmatmul.f32.gmra.mxu0 %v226
        %v381 = vpop.f32.mrf.mxu0
        %v382 = vadd.f32 %v362, %v381
        %383 = vdwg.mxu0
        %384 = vmatpush.msra.mxu0 %v292
        %385 = vmatpush.msra.mxu0 %v290
        %386 = vmatpush.msra.mxu0 %v288
        %387 = vmatpush.msra.mxu0 %v286
        %388 = vmatpush.msra.mxu0 %v284
        %389 = vmatpush.msra.mxu0 %v282
        %390 = vmatpush.msra.mxu0 %v280
        %391 = vmatpush.msra.mxu0 %v278
        %392 = vmatpush.msra.mxu0 %v276
        %393 = vmatpush.msra.mxu0 %v274
        %394 = vmatpush.msra.mxu0 %v272
        %395 = vmatpush.msra.mxu0 %v270
        %396 = vmatpush.msra.mxu0 %v268
        %397 = vmatpush.msra.mxu0 %v266
        %398 = vmatpush.msra.mxu0 %v264
        %399 = vmatpush.msra.mxu0 %v262
        %400 = vmatmul.f32.gmra.mxu0 %v227
        %v401 = vpop.f32.mrf.mxu0
        %v402 = vadd.f32 %v382, %v401
        %403 = vdwg.mxu0
        %404 = vmatpush.msra.mxu0 %v324
        %405 = vmatpush.msra.mxu0 %v322
        %406 = vmatpush.msra.mxu0 %v320
        %407 = vmatpush.msra.mxu0 %v318
        %408 = vmatpush.msra.mxu0 %v316
        %409 = vmatpush.msra.mxu0 %v314
        %410 = vmatpush.msra.mxu0 %v312
        %411 = vmatpush.msra.mxu0 %v310
        %412 = vmatpush.msra.mxu0 %v308
        %413 = vmatpush.msra.mxu0 %v306
        %414 = vmatpush.msra.mxu0 %v304
        %415 = vmatpush.msra.mxu0 %v302
        %416 = vmatpush.msra.mxu0 %v300
        %417 = vmatpush.msra.mxu0 %v298
        %418 = vmatpush.msra.mxu0 %v296
        %419 = vmatpush.msra.mxu0 %v294
        %420 = vmatmul.f32.gmra.mxu0 %v228
        %v421 = vpop.f32.mrf.mxu0
        %v422 = vadd.f32 %v402, %v421
        %423 = vdwg.mxu0
        %424 = vmatpush.msra.mxu0 %v356
        %425 = vmatpush.msra.mxu0 %v354
        %426 = vmatpush.msra.mxu0 %v352
        %427 = vmatpush.msra.mxu0 %v350
        %428 = vmatpush.msra.mxu0 %v348
        %429 = vmatpush.msra.mxu0 %v346
        %430 = vmatpush.msra.mxu0 %v344
        %431 = vmatpush.msra.mxu0 %v342
        %432 = vmatpush.msra.mxu0 %v340
        %433 = vmatpush.msra.mxu0 %v338
        %434 = vmatpush.msra.mxu0 %v336
        %435 = vmatpush.msra.mxu0 %v334
        %436 = vmatpush.msra.mxu0 %v332
        %437 = vmatpush.msra.mxu0 %v330
        %438 = vmatpush.msra.mxu0 %v328
        %439 = vmatpush.msra.mxu0 %v326
        %440 = vmatmul.f32.gmra.mxu0 %v229
        %v441 = vpop.f32.mrf.mxu0
        %v442 = vadd.f32 %v422, %v441
        %443 = vdwg.mxu0
        %444 = vmatpush.msra.mxu0 %v261
        %445 = vmatpush.msra.mxu0 %v259
        %446 = vmatpush.msra.mxu0 %v257
        %447 = vmatpush.msra.mxu0 %v255
        %448 = vmatpush.msra.mxu0 %v253
        %449 = vmatpush.msra.mxu0 %v251
        %450 = vmatpush.msra.mxu0 %v249
        %451 = vmatpush.msra.mxu0 %v247
        %452 = vmatpush.msra.mxu0 %v245
        %453 = vmatpush.msra.mxu0 %v243
        %454 = vmatpush.msra.mxu0 %v241
        %455 = vmatpush.msra.mxu0 %v239
        %456 = vmatpush.msra.mxu0 %v237
        %457 = vmatpush.msra.mxu0 %v235
        %458 = vmatpush.msra.mxu0 %v233
        %459 = vmatpush.msra.mxu0 %v231
        %460 = vmatmul.f32.gmra.mxu0 %v226
        %v461 = vpop.f32.mrf.mxu0
        %v462 = vadd.f32 %v362, %v461
        %463 = vdwg.mxu0
        %464 = vmatpush.msra.mxu0 %v293
        %465 = vmatpush.msra.mxu0 %v291
        %466 = vmatpush.msra.mxu0 %v289
        %467 = vmatpush.msra.mxu0 %v287
        %468 = vmatpush.msra.mxu0 %v285
        %469 = vmatpush.msra.mxu0 %v283
        %470 = vmatpush.msra.mxu0 %v281
        %471 = vmatpush.msra.mxu0 %v279
        %472 = vmatpush.msra.mxu0 %v277
        %473 = vmatpush.msra.mxu0 %v275
        %474 = vmatpush.msra.mxu0 %v273
        %475 = vmatpush.msra.mxu0 %v271
        %476 = vmatpush.msra.mxu0 %v269
        %477 = vmatpush.msra.mxu0 %v267
        %478 = vmatpush.msra.mxu0 %v265
        %479 = vmatpush.msra.mxu0 %v263
        %480 = vmatmul.f32.gmra.mxu0 %v227
        %v481 = vpop.f32.mrf.mxu0
        %v482 = vadd.f32 %v462, %v481
        %483 = vdwg.mxu0
        %484 = vmatpush.msra.mxu0 %v325
        %485 = vmatpush.msra.mxu0 %v323
        %486 = vmatpush.msra.mxu0 %v321
        %487 = vmatpush.msra.mxu0 %v319
        %488 = vmatpush.msra.mxu0 %v317
        %489 = vmatpush.msra.mxu0 %v315
        %490 = vmatpush.msra.mxu0 %v313
        %491 = vmatpush.msra.mxu0 %v311
        %492 = vmatpush.msra.mxu0 %v309
        %493 = vmatpush.msra.mxu0 %v307
        %494 = vmatpush.msra.mxu0 %v305
        %495 = vmatpush.msra.mxu0 %v303
        %496 = vmatpush.msra.mxu0 %v301
        %497 = vmatpush.msra.mxu0 %v299
        %498 = vmatpush.msra.mxu0 %v297
        %499 = vmatpush.msra.mxu0 %v295
        %500 = vmatmul.f32.gmra.mxu0 %v228
        %v501 = vpop.f32.mrf.mxu0
        %v502 = vadd.f32 %v482, %v501
        %503 = vdwg.mxu0
        %504 = vmatpush.msra.mxu0 %v357
        %505 = vmatpush.msra.mxu0 %v355
        %506 = vmatpush.msra.mxu0 %v353
        %507 = vmatpush.msra.mxu0 %v351
        %508 = vmatpush.msra.mxu0 %v349
        %509 = vmatpush.msra.mxu0 %v347
        %510 = vmatpush.msra.mxu0 %v345
        %511 = vmatpush.msra.mxu0 %v343
        %512 = vmatpush.msra.mxu0 %v341
        %513 = vmatpush.msra.mxu0 %v339
        %514 = vmatpush.msra.mxu0 %v337
        %515 = vmatpush.msra.mxu0 %v335
        %516 = vmatpush.msra.mxu0 %v333
        %517 = vmatpush.msra.mxu0 %v331
        %518 = vmatpush.msra.mxu0 %v329
        %519 = vmatpush.msra.mxu0 %v327
        %520 = vmatmul.f32.gmra.mxu0 %v229
        %v521 = vpop.f32.mrf.mxu0
        %v522 = vadd.f32 %v502, %v521
        %523 = vdwg.mxu0
        %524 = vst [vmem:[%s223] sm:$0xff] %v442
        %525 = vst [vmem:[%s223 + $0x8] sm:$0xff] %v522
        %s526 = sand.u32 %s113, 1
        %s527 = scalar_lea.sflag [#allocation4], %s526
        %s528 = sand.u32 %s113, 1
        %s529 = smul.addr %s528, 16
        %s530 = scalar_lea.vmem [#allocation7], %s529
        // Predicated region
        $region41: #{tpu_custom_call.1} parent=31 // pred_check
          %p531 = pneg %p123
        $region42: #{tpu_custom_call.1} parent=31 // pred_check_branch
          %533 = sbr.rel (%p531) target = $region44
        $region43: #{tpu_custom_call.1} parent=31 // pred_region
          %s534 = smul.u32 2, %s26
          %536 = vsyncadd %s527, 0
          %s537 = smul.addr %s25, 2
          %s538 = sadd.s32 %s534, %s537
          %s539 = smul.addr %s538, 8
          %s540 = scalar_lea.hbm %s3, %s539
          %s542 = sshll.u32 %s530, 4
          %s543 = int_to_ptr.vmem [resolvable:$true] %s542
          %s544 = sshll.u32 %s540, 4
          %s545 = int_to_ptr.hbm [resolvable:$true] %s544
          %547 = dma.vmem_to_hbm [thread:$0]  %s543, 256, %s545, %s527
        $region44: #{tpu_custom_call.1} parent=31 // pred_fallthru
          _
      $region32: #{tpu_custom_call.1} parent=5 // pred_fallthru
        _
      %p548 = scmp.le.s32.totalorder 2, %s16
      // Predicated region
      $region45: #{tpu_custom_call.1} parent=5 // pred_check
        %p549 = pneg %p548
      $region46: #{tpu_custom_call.1} parent=5 // pred_check_branch
        %551 = sbr.rel (%p549) target = $region48
      $region47: #{tpu_custom_call.1} parent=5 // pred_region
        %s552 = ssub.s32 %s16, 2
        // Predicated region
        $region49: #{tpu_custom_call.1} parent=47 // pred_check
          %p553 = pneg %p129
        $region50: #{tpu_custom_call.1} parent=47 // pred_check_branch
          %555 = sbr.rel (%p553) target = $region52
        $region51: #{tpu_custom_call.1} parent=47 // pred_region
          %s556 = sand.u32 %s114, 1
          %s557 = scalar_lea.sflag [#allocation4], %s556
          %s558 = sand.u32 %s114, 1
          %s559 = smul.addr %s558, 16
          %s560 = scalar_lea.vmem [#allocation7], %s559
          %562 = dma.done %s557, 256
        $region52: #{tpu_custom_call.1} parent=47 // pred_fallthru
          _
      $region48: #{tpu_custom_call.1} parent=5 // pred_fallthru
        _
    $region6: #{tpu_custom_call.1} parent=1 // loop_footer
      %s20 = sadd.s32 1, %s16
    $region7: #{tpu_custom_call.1} parent=1 // loop_footer_branch
      %15 = sbr.rel target = $region3
    $region8: #{tpu_custom_call.1} parent=1 // loop_exit
      _
    %563 = vsyncpa [#allocation3], 1
    %s564 = scalar_lea.sflag [#allocation3], 1
    %565 = vsyncpa %s564, 1
    %566 = vsyncpa [#allocation6], 1
    %567 = vsyncpa [#allocation4], 1
    %s568 = scalar_lea.sflag [#allocation4], 1
    %569 = vsyncpa %s568, 1

</llo_original>
